<compile_context>
chip_gen: v6e
topology: v6e:2x2x1
jax: 0.10.0
libtpu: 0.0.40
codegen_flags: <defaults>
</compile_context>

<pallas_src>
import math
import functools

import jax
import jax.numpy as jnp
from jax.experimental import pallas as pl
from jax.experimental.pallas import tpu as pltpu


def _round_up(x: int, m: int) -> int:
    return (x + m - 1) // m * m


def _cdiv(a: int, b: int) -> int:
    return (a + b - 1) // b


def _vmem_capacity_bytes() -> int:
    """Physical VMEM per TensorCore; conservative fallback if the query fails."""
    try:
        cap = getattr(pltpu.get_tpu_info(), "vmem_capacity_bytes", None)
        if cap:
            return int(cap)
    except Exception:
        pass
    return 64 * 1024 * 1024   # v7x per-TC VMEM (smallest of the supported generations)


def _basic_head_kernel(x_ref, w1_ref, b1_ref, w2_ref, b2_ref, o_ref, h_ref):
    # x_ref : [TB, Din_p]      compute dtype (bf16)
    # w1_ref: [Din_p, Dh_p]    compute dtype (grid-invariant)    b1_ref: [1, Dh_p]  f32
    # w2_ref: [Dh_p, TN]       compute dtype (streamed over N)   b2_ref: [1, TN]    f32
    # o_ref : [TB, TN]         downstream dtype, lane-dense
    # h_ref : [TB, Dh_p]       VMEM scratch holding relu(fc1(x)) of the current batch tile
    @pl.when(pl.program_id(1) == 0)        # new batch tile -> recompute hidden activation
    def _():
        h = jnp.dot(x_ref[...], w1_ref[...], preferred_element_type=jnp.float32)
        h = jnp.maximum(h + b1_ref[...], 0.0)   # fc1 bias + ReLU (dropout = identity, eval)
        h_ref[...] = h.astype(h_ref.dtype)      # TODO(synk): optional f32 hidden path for precision-sensitive heads
    y = jnp.dot(h_ref[...], w2_ref[...], preferred_element_type=jnp.float32)
    o_ref[...] = (y + b2_ref[...]).astype(o_ref.dtype)


def prepare_basic_head_params(w1, b1, w2, b2, compute_dtype=jnp.bfloat16):
    """One-time weight prep (hoisted out of the forward): zero-pad every feature dim to a
    multiple of 128 lanes and cast matmul operands to the MXU-native compute dtype."""
    d_in, d_hid = w1.shape
    d_out = w2.shape[1]
    assert w2.shape[0] == d_hid and b1.shape == (d_hid,) and b2.shape == (d_out,)
    d_in_p, d_hid_p, d_out_p = (_round_up(d, 128) for d in (d_in, d_hid, d_out))
    cd = jnp.dtype(compute_dtype)
    w1_p = jnp.zeros((d_in_p, d_hid_p), cd).at[:d_in, :d_hid].set(w1.astype(cd))
    w2_p = jnp.zeros((d_hid_p, d_out_p), cd).at[:d_hid, :d_out].set(w2.astype(cd))
    b1_p = jnp.zeros((1, d_hid_p), jnp.float32).at[0, :d_hid].set(b1.astype(jnp.float32))
    b2_p = jnp.zeros((1, d_out_p), jnp.float32).at[0, :d_out].set(b2.astype(jnp.float32))
    return (w1_p, b1_p, w2_p, b2_p), d_out


def basic_head_forward(x, w1_p, b1_p, w2_p, b2_p, *, d_out, transform=None,
                       block_b=256, block_n=512, out_dtype=None,
                       single_buffer_weights=False):
    """Fused BasicHead forward (eval mode). x: [B, d_in] -> [B, d_out].

    Expects pre-padded / pre-cast weights from prepare_basic_head_params().
    """
    B, d_in = x.shape
    d_in_p, d_hid_p = w1_p.shape
    d_out_p = w2_p.shape[1]
    assert d_in_p == _round_up(d_in, 128), "weights were prepared for a different input_dim"
    assert w2_p.shape[0] == d_hid_p and d_out <= d_out_p

    cd = w1_p.dtype
    od = jnp.dtype(out_dtype) if out_dtype is not None else jnp.dtype(x.dtype)

    # ---- batch tiling: multiple of 16 rows (bf16 packing), minimal padding, and >=2 tiles
    #      when possible so ("parallel", ...) can shard the batch axis across both v7x TCs ----
    row = 16
    n_b = max(1, _cdiv(B, max(block_b, row)))
    tb = _round_up(_cdiv(B, n_b), row)
    if n_b == 1 and tb >= 2 * row:
        n_b = 2
        tb = _round_up(_cdiv(B, n_b), row)
    B_p = n_b * tb

    # ---- d_out tiling: tn is a multiple of 128, divides d_out_p, and is <= block_n ----
    units = d_out_p // 128
    max_k = max(1, block_n // 128)
    k = next(c for c in range(min(max_k, units), 0, -1) if units % c == 0)
    tn = 128 * k
    n_n = d_out_p // tn

    # ---- activation pad / cast (skipped when already aligned) ----
    if (B_p, d_in_p) != (B, d_in):
        x_c = jnp.zeros((B_p, d_in_p), cd).at[:B, :d_in].set(x.astype(cd))
    else:
        x_c = x.astype(cd)

    # ---- VMEM budget (generation-aware) and explicit scoped-VMEM limit ----
    isz = jnp.dtype(cd).itemsize
    osz = od.itemsize
    vmem_est = (2 * tb * d_in_p * isz            # x tile, double-buffered
                + 2 * d_in_p * d_hid_p * isz     # W1 (grid-invariant; counted 2x conservatively)
                + 2 * d_hid_p * 4                # b1
                + 2 * d_hid_p * tn * isz         # W2 tile, double-buffered (streamed over N)
                + 2 * tn * 4                     # b2 tile
                + 2 * tb * tn * osz              # output tile, double-buffered
                + tb * d_hid_p * isz)            # hidden-activation scratch
    capacity = _vmem_capacity_bytes()
    budget = int(0.625 * capacity)               # ~40 MiB on v7x, ~80 MiB on v5e/v6e
    assert vmem_est <= budget, (
        f"head too large for the resident-W1 strategy (needs {vmem_est} B, budget {budget} B); "
        "reduce block_b/block_n or add a K grid axis over d_in/d_hid")
    vmem_limit = min(int(0.9 * capacity), max(int(1.25 * vmem_est), 16 * 1024 * 1024))

    # ---- BlockSpecs ----
    wmode = {"pipeline_mode": pl.Buffered(1)} if single_buffer_weights else {}
    in_specs = [
        pl.BlockSpec((tb, d_in_p), lambda i, n: (i, 0)),                 # x: per batch tile
        pl.BlockSpec((d_in_p, d_hid_p), lambda i, n: (0, 0), **wmode),   # W1: grid-invariant
        pl.BlockSpec((1, d_hid_p), lambda i, n: (0, 0), **wmode),        # b1: grid-invariant
        pl.BlockSpec((d_hid_p, tn), lambda i, n: (0, n)),                # W2: streamed over d_out
        pl.BlockSpec((1, tn), lambda i, n: (0, n)),                      # b2
    ]
    out_spec = pl.BlockSpec((tb, tn), lambda i, n: (i, n))               # lane-dense output tile

    flops = 2 * B_p * d_hid_p * (d_in_p + d_out_p)
    bytes_accessed = (B_p * d_in_p * isz + d_in_p * d_hid_p * isz
                      + n_b * d_hid_p * d_out_p * isz                    # W2 re-streamed per batch tile
                      + (d_hid_p + d_out_p) * 4 + B_p * d_out_p * osz)

    out = pl.pallas_call(
        _basic_head_kernel,
        out_shape=jax.ShapeDtypeStruct((B_p, d_out_p), od),
        grid_spec=pltpu.PrefetchScalarGridSpec(
            num_scalar_prefetch=0,
            grid=(n_b, n_n),
            in_specs=in_specs,
            out_specs=out_spec,
            scratch_shapes=[pltpu.VMEM((tb, d_hid_p), cd)],
        ),
        compiler_params=pltpu.CompilerParams(
            dimension_semantics=("parallel", "arbitrary"),
            vmem_limit_bytes=vmem_limit),
        cost_estimate=pl.CostEstimate(flops=flops, transcendentals=0,
                                      bytes_accessed=bytes_accessed),
    )(x_c, w1_p, b1_p, w2_p, b2_p)

    if (B_p, d_out_p) != (B, d_out):
        out = out[:B, :d_out]                    # strip batch / lane padding only if present
    if transform is not None:
        out = transform(out)                     # user-supplied transform (identity here)
    return out


def init_basic_head_params(key, input_dim, output_dim, dtype=jnp.float32):
    """Deterministic synthetic init matching nn.Linear shapes (stored transposed)."""
    hidden_dim = int(math.sqrt(input_dim * output_dim))
    k1, k2, k3, k4 = jax.random.split(key, 4)
    lim1 = 1.0 / math.sqrt(input_dim)
    lim2 = 1.0 / math.sqrt(hidden_dim)
    w1 = jax.random.uniform(k1, (input_dim, hidden_dim), dtype, -lim1, lim1)
    b1 = jax.random.uniform(k2, (hidden_dim,), dtype, -lim1, lim1)
    w2 = jax.random.uniform(k3, (hidden_dim, output_dim), dtype, -lim2, lim2)
    b2 = jax.random.uniform(k4, (output_dim,), dtype, -lim2, lim2)
    return w1, b1, w2, b2, hidden_dim


if __name__ == "__main__":
    key = jax.random.PRNGKey(0)
    k_param, k_x = jax.random.split(key)

    batch, input_dim, output_dim = 16, 32, 8       # hidden_dim = int(sqrt(32*8)) = 16
    w1, b1, w2, b2, hidden_dim = init_basic_head_params(k_param, input_dim, output_dim)
    x = jax.random.normal(k_x, (batch, input_dim), jnp.float32)

    # One-time weight prep (pad + bf16 cast), hoisted out of the per-call forward path.
    (w1_p, b1_p, w2_p, b2_p), d_out = prepare_basic_head_params(w1, b1, w2, b2)

    fwd = jax.jit(functools.partial(basic_head_forward,
                                    d_out=d_out,
                                    transform=lambda t: t,        # identity transform
                                    block_b=256, block_n=512))
    out = jax.block_until_ready(fwd(x, w1_p, b1_p, w2_p, b2_p))
    assert out.shape == (batch, output_dim)
    assert out.dtype == x.dtype

    # Reference mirroring the kernel arithmetic (bf16 inputs, f32 accumulate, bf16 hidden).
    xb, w1b, w2b = (a.astype(jnp.bfloat16) for a in (x, w1, w2))
    h_ref = jnp.maximum(jnp.dot(xb, w1b, preferred_element_type=jnp.float32) + b1, 0.0)
    ref = jnp.dot(h_ref.astype(jnp.bfloat16), w2b, preferred_element_type=jnp.float32) + b2
    assert jnp.allclose(out, ref, atol=1e-4, rtol=1e-4), \
        f"max abs err {jnp.max(jnp.abs(out - ref))}"

    # Loose sanity check against the full-f32 eval-mode reference.
    ref_f32 = jnp.maximum(x @ w1 + b1, 0.0) @ w2 + b2
    assert jnp.allclose(out, ref_f32, atol=5e-2, rtol=5e-2)

    print("KERNEL_OK")
</pallas_src>

<mosaic_0001>
module attributes {stable_mosaic.version = 11 : i64} {
  func.func @_basic_head_kernel(%arg0: i32, %arg1: i32, %arg2: memref<16x128xbf16, #tpu.memory_space<vmem>>, %arg3: memref<128x128xbf16, #tpu.memory_space<vmem>>, %arg4: memref<1x128xf32, #tpu.memory_space<vmem>>, %arg5: memref<128x128xbf16, #tpu.memory_space<vmem>>, %arg6: memref<1x128xf32, #tpu.memory_space<vmem>>, %arg7: memref<16x128xf32, #tpu.memory_space<vmem>>, %arg8: memref<16x128xbf16, #tpu.memory_space<vmem>>) attributes {dimension_semantics = [#tpu.dimension_semantics<parallel>, #tpu.dimension_semantics<arbitrary>], iteration_bounds = array<i64: 1, 1>, scalar_prefetch = 0 : i64, scratch_operands = 1 : i64, tpu.core_type = #tpu.core_type<tc>, window_params = [{transform_indices = @transform_0, window_bounds = array<i64: 16, 128>}, {pipeline_mode = #tpu.pipeline_mode<synchronous>, transform_indices = @transform_1, window_bounds = array<i64: 128, 128>}, {pipeline_mode = #tpu.pipeline_mode<synchronous>, transform_indices = @transform_2, window_bounds = array<i64: 1, 128>}, {transform_indices = @transform_3, window_bounds = array<i64: 128, 128>}, {transform_indices = @transform_4, window_bounds = array<i64: 1, 128>}, {transform_indices = @transform_5, window_bounds = array<i64: 16, 128>}]} {
    %c0_i32 = arith.constant 0 : i32
    %0 = arith.cmpi eq, %arg1, %c0_i32 : i32
    %1 = arith.extui %0 : i1 to i32
    %c0_i32_0 = arith.constant 0 : i32
    %2 = arith.cmpi ne, %1, %c0_i32_0 : i32
    scf.if %2 {
      %c0_8 = arith.constant 0 : index
      %c0_9 = arith.constant 0 : index
      %10 = vector.load %arg2[%c0_8, %c0_9] : memref<16x128xbf16, #tpu.memory_space<vmem>>, vector<16x128xbf16>
      %c0_10 = arith.constant 0 : index
      %c0_11 = arith.constant 0 : index
      %11 = vector.load %arg3[%c0_10, %c0_11] : memref<128x128xbf16, #tpu.memory_space<vmem>>, vector<128x128xbf16>
      %cst_12 = arith.constant dense<0.000000e+00> : vector<16x128xf32>
      %12 = tpu.matmul %10, %11, %cst_12 {dimension_numbers = #tpu.dot_dimension_numbers<[1], [0], [0], [1], [0, 0, 1, 1], [], []>} : vector<16x128xbf16>, vector<128x128xbf16>, vector<16x128xf32> -> vector<16x128xf32>
      %c0_13 = arith.constant 0 : index
      %c0_14 = arith.constant 0 : index
      %13 = vector.load %arg4[%c0_13, %c0_14] : memref<1x128xf32, #tpu.memory_space<vmem>>, vector<1x128xf32>
      %14 = vector.broadcast %13 : vector<1x128xf32> to vector<16x128xf32>
      %15 = arith.addf %12, %14 : vector<16x128xf32>
      %cst_15 = arith.constant 0.000000e+00 : f32
      %16 = vector.broadcast %cst_15 : f32 to vector<16x128xf32>
      %17 = arith.maximumf %15, %16 : vector<16x128xf32>
      %18 = arith.truncf %17 : vector<16x128xf32> to vector<16x128xbf16>
      %c0_16 = arith.constant 0 : index
      %c0_17 = arith.constant 0 : index
      %19 = vector.load %arg8[%c0_16, %c0_17] : memref<16x128xbf16, #tpu.memory_space<vmem>>, vector<16x128xbf16>
      tpu.vector_store %arg8[%c0_16, %c0_17], %18 {strides = array<i32>} : memref<16x128xbf16, #tpu.memory_space<vmem>>, vector<16x128xbf16>,
    } else {
    }
    %c0 = arith.constant 0 : index
    %c0_1 = arith.constant 0 : index
    %3 = vector.load %arg8[%c0, %c0_1] : memref<16x128xbf16, #tpu.memory_space<vmem>>, vector<16x128xbf16>
    %c0_2 = arith.constant 0 : index
    %c0_3 = arith.constant 0 : index
    %4 = vector.load %arg5[%c0_2, %c0_3] : memref<128x128xbf16, #tpu.memory_space<vmem>>, vector<128x128xbf16>
    %cst = arith.constant dense<0.000000e+00> : vector<16x128xf32>
    %5 = tpu.matmul %3, %4, %cst {dimension_numbers = #tpu.dot_dimension_numbers<[1], [0], [0], [1], [0, 0, 1, 1], [], []>} : vector<16x128xbf16>, vector<128x128xbf16>, vector<16x128xf32> -> vector<16x128xf32>
    %c0_4 = arith.constant 0 : index
    %c0_5 = arith.constant 0 : index
    %6 = vector.load %arg6[%c0_4, %c0_5] : memref<1x128xf32, #tpu.memory_space<vmem>>, vector<1x128xf32>
    %7 = vector.broadcast %6 : vector<1x128xf32> to vector<16x128xf32>
    %8 = arith.addf %5, %7 : vector<16x128xf32>
    %c0_6 = arith.constant 0 : index
    %c0_7 = arith.constant 0 : index
    %9 = vector.load %arg7[%c0_6, %c0_7] : memref<16x128xf32, #tpu.memory_space<vmem>>, vector<16x128xf32>
    tpu.vector_store %arg7[%c0_6, %c0_7], %8 {strides = array<i32>} : memref<16x128xf32, #tpu.memory_space<vmem>>, vector<16x128xf32>,
    return
  }
  func.func @transform_0(%arg0: i32, %arg1: i32) -> (i32, i32) {
    %c0_i32 = arith.constant 0 : i32
    %c0_i32_0 = arith.constant 0 : i32
    return %arg0, %c0_i32 : i32, i32
  }
  func.func @transform_1(%arg0: i32, %arg1: i32) -> (i32, i32) {
    %c0_i32 = arith.constant 0 : i32
    %c0_i32_0 = arith.constant 0 : i32
    %c0_i32_1 = arith.constant 0 : i32
    return %c0_i32, %c0_i32_0 : i32, i32
  }
  func.func @transform_2(%arg0: i32, %arg1: i32) -> (i32, i32) {
    %c0_i32 = arith.constant 0 : i32
    %c0_i32_0 = arith.constant 0 : i32
    %c0_i32_1 = arith.constant 0 : i32
    return %c0_i32, %c0_i32_0 : i32, i32
  }
  func.func @transform_3(%arg0: i32, %arg1: i32) -> (i32, i32) {
    %c0_i32 = arith.constant 0 : i32
    %c0_i32_0 = arith.constant 0 : i32
    return %c0_i32, %arg1 : i32, i32
  }
  func.func @transform_4(%arg0: i32, %arg1: i32) -> (i32, i32) {
    %c0_i32 = arith.constant 0 : i32
    %c0_i32_0 = arith.constant 0 : i32
    return %c0_i32, %arg1 : i32, i32
  }
  func.func @transform_5(%arg0: i32, %arg1: i32) -> (i32, i32) {
    %c0_i32 = arith.constant 0 : i32
    return %arg0, %arg1 : i32, i32
  }
}

</mosaic_0001>

<llo_original>
// kernel: basic_head_forward.1
$region0: #{basic_head_forward.1}
  #allocation0 [shape = 'u32[]', space=smem, size = 0x4, offset = 0x4, fixed_abs, tag = 'smem constant byte address 0x4 - core index']
  #allocation1 [shape = 'u32[144,128]{1,0:T(1,128)}', space=vmem, size = 0x12000, scoped, tag = 'internal scratch']
  #allocation2 [shape = 'bf16[16,128]{1,0:T(8,128)(2,1)}', space=vmem, size = 0x1000, scoped, tag = 'scratch operand']
  %s0 = inlined_call_operand.vmem [shape: bf16[16,128], index: 0, kind: input, shape index: {}]
  %s1 = inlined_call_operand.hbm [shape: bf16[128,128], index: 1, kind: input, shape index: {}]
  %s2 = inlined_call_operand.vmem [shape: f32[1,128], index: 2, kind: input, shape index: {}]
  %s3 = inlined_call_operand.hbm [shape: bf16[128,128], index: 3, kind: input, shape index: {}]
  %s4 = inlined_call_operand.vmem [shape: f32[1,128], index: 4, kind: input, shape index: {}]
  %s5 = inlined_call_operand.vmem [shape: f32[16,128], index: 5, kind: output, shape index: {}]
  %s6 = sld [smem:[#allocation0]]
  $region42: #{basic_head_forward.1} parent=0
    _
  %s8 = ssub.s32 1, %s6
  %s9 = scalar_select 0, %s8, %s6
  $region1: #{basic_head_forward.1} parent=0
    #allocation3 [shape = 'u8[32768]{0}', space=vmem, size = 0x8000, scoped, tag = 'input window, operand 1, single buffered']
    #allocation4 [shape = 's32[1]{0}', space=sflag, size = 0x4, scoped, tag = 'scoped memory for basic_head_forward.1']
    #allocation5 [shape = 'u8[32768]{0}', space=vmem, size = 0x8000, scoped, tag = 'input window, operand 3, single buffered']
    #allocation6 [shape = 's32[1]{0}', space=sflag, size = 0x4, scoped, tag = 'scoped memory for basic_head_forward.1']
    %10 = vsyncpa [#allocation4], 0
    %11 = vsyncpa [#allocation6], 0
    // Predicated region
    $region2: #{basic_head_forward.1} parent=1 // pred_check
      _
    $region3: #{basic_head_forward.1} parent=1 // pred_check_branch
      %13 = sbr.rel (0) target = $region5
    $region4: #{basic_head_forward.1} parent=1 // pred_region
      _
    $region5: #{basic_head_forward.1} parent=1 // pred_fallthru
      _
    // Predicated region
    $region6: #{basic_head_forward.1} parent=1 // pred_check
      _
    $region7: #{basic_head_forward.1} parent=1 // pred_check_branch
      %15 = sbr.rel (0) target = $region9
    $region8: #{basic_head_forward.1} parent=1 // pred_region
      %s17 = ssub.s32 1024, 1024
      %18 = vsyncadd [#allocation4], %s17
      %s19 = sshll.u32 [#allocation3], 4
      %s20 = int_to_ptr.vmem [resolvable:$true] %s19
      %25 = dma.hbm_to_vmem [thread:$0]  %s1, 1024, %s20, [#allocation4], 64, 64, 4
    $region9: #{basic_head_forward.1} parent=1 // pred_fallthru
      _
    // Predicated region
    $region10: #{basic_head_forward.1} parent=1 // pred_check
      _
    $region11: #{basic_head_forward.1} parent=1 // pred_check_branch
      %27 = sbr.rel (0) target = $region13
    $region12: #{basic_head_forward.1} parent=1 // pred_region
      _
    $region13: #{basic_head_forward.1} parent=1 // pred_fallthru
      _
    // Predicated region
    $region14: #{basic_head_forward.1} parent=1 // pred_check
      _
    $region15: #{basic_head_forward.1} parent=1 // pred_check_branch
      %29 = sbr.rel (0) target = $region17
    $region16: #{basic_head_forward.1} parent=1 // pred_region
      %s31 = ssub.s32 1024, 1024
      %32 = vsyncadd [#allocation6], %s31
      %s33 = sshll.u32 [#allocation5], 4
      %s34 = int_to_ptr.vmem [resolvable:$true] %s33
      %39 = dma.hbm_to_vmem [thread:$0]  %s3, 1024, %s34, [#allocation6], 64, 64, 4
    $region17: #{basic_head_forward.1} parent=1 // pred_fallthru
      _
    // Predicated region
    $region18: #{basic_head_forward.1} parent=1 // pred_check
      _
    $region19: #{basic_head_forward.1} parent=1 // pred_check_branch
      %41 = sbr.rel (0) target = $region21
    $region20: #{basic_head_forward.1} parent=1 // pred_region
      _
    $region21: #{basic_head_forward.1} parent=1 // pred_fallthru
      _
    // Predicated region
    $region22: #{basic_head_forward.1} parent=1 // pred_check
      _
    $region23: #{basic_head_forward.1} parent=1 // pred_check_branch
      %43 = sbr.rel (0) target = $region25
    $region24: #{basic_head_forward.1} parent=1 // pred_region
      %44 = dma.done [#allocation4], 1024
    $region25: #{basic_head_forward.1} parent=1 // pred_fallthru
      _
    // Predicated region
    $region26: #{basic_head_forward.1} parent=1 // pred_check
      _
    $region27: #{basic_head_forward.1} parent=1 // pred_check_branch
      %46 = sbr.rel (0) target = $region29
    $region28: #{basic_head_forward.1} parent=1 // pred_region
      %47 = dma.done [#allocation6], 1024
    $region29: #{basic_head_forward.1} parent=1 // pred_fallthru
      _
    %p49 = scmp.eq.s32.totalorder 0, 0
    // Predicated region
    $region30: #{basic_head_forward.1} parent=1 // pred_check
      %p50 = pneg %p49
    $region31: #{basic_head_forward.1} parent=1 // pred_check_branch
      %52 = sbr.rel (%p50) target = $region33
    $region32: #{basic_head_forward.1} parent=1 // pred_region
      %v53 = vld [vmem:[%s0] sm:$0xf]
      %v54 = vld [vmem:[%s0 + $0x4] sm:$0xf]
      %v55 = vld [vmem:[#allocation3] sm:$0xf]
      %v56 = vld [vmem:[#allocation3 + $0x4] sm:$0xf]
      %v57 = vld [vmem:[#allocation3 + $0x8] sm:$0xf]
      %v58 = vld [vmem:[#allocation3 + $0xc] sm:$0xf]
      %v59 = vld [vmem:[#allocation3 + $0x10] sm:$0xf]
      %v60 = vld [vmem:[#allocation3 + $0x14] sm:$0xf]
      %v61 = vld [vmem:[#allocation3 + $0x18] sm:$0xf]
      %v62 = vld [vmem:[#allocation3 + $0x1c] sm:$0xf]
      %v63 = vld [vmem:[#allocation3 + $0x20] sm:$0xf]
      %v64 = vld [vmem:[#allocation3 + $0x24] sm:$0xf]
      %v65 = vld [vmem:[#allocation3 + $0x28] sm:$0xf]
      %v66 = vld [vmem:[#allocation3 + $0x2c] sm:$0xf]
      %v67 = vld [vmem:[#allocation3 + $0x30] sm:$0xf]
      %v68 = vld [vmem:[#allocation3 + $0x34] sm:$0xf]
      %v69 = vld [vmem:[#allocation3 + $0x38] sm:$0xf]
      %v70 = vld [vmem:[#allocation3 + $0x3c] sm:$0xf]
      %v71 = vld [vmem:[%s2] sm:$0x1]
      %v73 = vlaneseq
      %v74 = vshrl.u32 %v73, 7
      %v75 = vsub.s32 0, %v74
      %v76 = vrot.slane %v71, %v75
      %v80 = vunpack.c.l.b16 %v53
      %v81 = vunpack.c.l.b16 %v54
      %v82 = vpack.c.b16 %v81, %v80
      %v100 = vunpack.c.l.b16 %v55
      %v101 = vunpack.c.l.b16 %v56
      %v102 = vunpack.c.l.b16 %v57
      %v103 = vunpack.c.l.b16 %v58
      %v104 = vunpack.c.l.b16 %v59
      %v105 = vunpack.c.l.b16 %v60
      %v106 = vunpack.c.l.b16 %v61
      %v107 = vunpack.c.l.b16 %v62
      %v108 = vunpack.c.l.b16 %v63
      %v109 = vunpack.c.l.b16 %v64
      %v110 = vunpack.c.l.b16 %v65
      %v111 = vunpack.c.l.b16 %v66
      %v112 = vunpack.c.l.b16 %v67
      %v113 = vunpack.c.l.b16 %v68
      %v114 = vunpack.c.l.b16 %v69
      %v115 = vunpack.c.l.b16 %v70
      %v116 = vpack.c.b16 %v101, %v100
      %v117 = vpack.c.b16 %v103, %v102
      %v118 = vpack.c.b16 %v105, %v104
      %v119 = vpack.c.b16 %v107, %v106
      %v120 = vpack.c.b16 %v109, %v108
      %v121 = vpack.c.b16 %v111, %v110
      %v122 = vpack.c.b16 %v113, %v112
      %v123 = vpack.c.b16 %v115, %v114
      %132 = vmatprep.subr.bf16.mxu0 0
      %133 = vmatpush1.bf16.msra.mxu0 %v123
      %134 = vmatprep.subr.bf16.mxu0 0
      %135 = vmatpush1.bf16.msra.mxu0 %v122
      %136 = vmatprep.subr.bf16.mxu0 0
      %137 = vmatpush1.bf16.msra.mxu0 %v121
      %138 = vmatprep.subr.bf16.mxu0 0
      %139 = vmatpush1.bf16.msra.mxu0 %v120
      %140 = vmatprep.subr.bf16.mxu0 0
      %141 = vmatpush1.bf16.msra.mxu0 %v119
      %142 = vmatprep.subr.bf16.mxu0 0
      %143 = vmatpush1.bf16.msra.mxu0 %v118
      %144 = vmatprep.subr.bf16.mxu0 0
      %145 = vmatpush1.bf16.msra.mxu0 %v117
      %146 = vmatprep.subr.bf16.mxu0 0
      %147 = vmatpush1.bf16.msra.mxu0 %v116
      %148 = vmatprep.subr.bf16.mxu0 0
      %149 = vmatpush2.bf16.msra.mxu0 0
      %150 = vmatprep.subr.bf16.mxu0 0
      %151 = vmatpush2.bf16.msra.mxu0 0
      %152 = vmatprep.subr.bf16.mxu0 0
      %153 = vmatpush2.bf16.msra.mxu0 0
      %154 = vmatprep.subr.bf16.mxu0 0
      %155 = vmatpush2.bf16.msra.mxu0 0
      %156 = vmatprep.subr.bf16.mxu0 0
      %157 = vmatpush2.bf16.msra.mxu0 0
      %158 = vmatprep.subr.bf16.mxu0 0
      %159 = vmatpush2.bf16.msra.mxu0 0
      %160 = vmatprep.subr.bf16.mxu0 0
      %161 = vmatpush2.bf16.msra.mxu0 0
      %162 = vmatprep.subr.bf16.mxu0 0
      %163 = vmatpush2.bf16.msra.mxu0 0
      %164 = vmatprep.mubr.bf16.mxu0 0
      %165 = vmatmul.mubr.bf16.gmra.mxu0 %v82
      %v166 = vpop.f32.mrf.mxu0
      %v167 = vadd.f32 %v76, %v166
      %v168 = vpop.f32.mrf.mxu0
      %v169 = vpop.f32.mrf.mxu0
      %v170 = vadd.f32 %v76, %v169
      %v171 = vpop.f32.mrf.mxu0
      %172 = vdwg.mxu0
      %v173 = vmax.f32 %v167, 0.0
      %v174 = vmax.f32 %v170, 0.0
      %v175 = vpack.c.bf16 %v174, %v173
      %v177 = vunpack.c.l.b16 %v175
      %v178 = vunpack.c.h.b16 %v175
      %v179 = vpack.c.b16 %v177, %v177
      %v180 = vpack.c.b16 %v178, %v178
      %183 = vst [vmem:[#allocation2] sm:$0xf] %v179
      %184 = vst [vmem:[#allocation2 + $0x4] sm:$0xf] %v180
    $region33: #{basic_head_forward.1} parent=1 // pred_fallthru
      _
    %v185 = vld [vmem:[#allocation2] sm:$0xf]
    %v186 = vld [vmem:[#allocation2 + $0x4] sm:$0xf]
    %v187 = vld [vmem:[#allocation5] sm:$0xf]
    %v188 = vld [vmem:[#allocation5 + $0x4] sm:$0xf]
    %v189 = vld [vmem:[#allocation5 + $0x8] sm:$0xf]
    %v190 = vld [vmem:[#allocation5 + $0xc] sm:$0xf]
    %v191 = vld [vmem:[#allocation5 + $0x10] sm:$0xf]
    %v192 = vld [vmem:[#allocation5 + $0x14] sm:$0xf]
    %v193 = vld [vmem:[#allocation5 + $0x18] sm:$0xf]
    %v194 = vld [vmem:[#allocation5 + $0x1c] sm:$0xf]
    %v195 = vld [vmem:[#allocation5 + $0x20] sm:$0xf]
    %v196 = vld [vmem:[#allocation5 + $0x24] sm:$0xf]
    %v197 = vld [vmem:[#allocation5 + $0x28] sm:$0xf]
    %v198 = vld [vmem:[#allocation5 + $0x2c] sm:$0xf]
    %v199 = vld [vmem:[#allocation5 + $0x30] sm:$0xf]
    %v200 = vld [vmem:[#allocation5 + $0x34] sm:$0xf]
    %v201 = vld [vmem:[#allocation5 + $0x38] sm:$0xf]
    %v202 = vld [vmem:[#allocation5 + $0x3c] sm:$0xf]
    %v203 = vld [vmem:[%s4] sm:$0x1]
    %v205 = vlaneseq
    %v206 = vshrl.u32 %v205, 7
    %v207 = vsub.s32 0, %v206
    %v208 = vrot.slane %v203, %v207
    %v212 = vunpack.c.l.b16 %v185
    %v213 = vunpack.c.l.b16 %v186
    %v214 = vpack.c.b16 %v213, %v212
    %v232 = vunpack.c.l.b16 %v187
    %v233 = vunpack.c.l.b16 %v188
    %v234 = vunpack.c.l.b16 %v189
    %v235 = vunpack.c.l.b16 %v190
    %v236 = vunpack.c.l.b16 %v191
    %v237 = vunpack.c.l.b16 %v192
    %v238 = vunpack.c.l.b16 %v193
    %v239 = vunpack.c.l.b16 %v194
    %v240 = vunpack.c.l.b16 %v195
    %v241 = vunpack.c.l.b16 %v196
    %v242 = vunpack.c.l.b16 %v197
    %v243 = vunpack.c.l.b16 %v198
    %v244 = vunpack.c.l.b16 %v199
    %v245 = vunpack.c.l.b16 %v200
    %v246 = vunpack.c.l.b16 %v201
    %v247 = vunpack.c.l.b16 %v202
    %v248 = vpack.c.b16 %v233, %v232
    %v249 = vpack.c.b16 %v235, %v234
    %v250 = vpack.c.b16 %v237, %v236
    %v251 = vpack.c.b16 %v239, %v238
    %v252 = vpack.c.b16 %v241, %v240
    %v253 = vpack.c.b16 %v243, %v242
    %v254 = vpack.c.b16 %v245, %v244
    %v255 = vpack.c.b16 %v247, %v246
    %264 = vmatprep.subr.bf16.mxu0 0
    %265 = vmatpush1.bf16.msra.mxu0 %v255
    %266 = vmatprep.subr.bf16.mxu0 0
    %267 = vmatpush1.bf16.msra.mxu0 %v254
    %268 = vmatprep.subr.bf16.mxu0 0
    %269 = vmatpush1.bf16.msra.mxu0 %v253
    %270 = vmatprep.subr.bf16.mxu0 0
    %271 = vmatpush1.bf16.msra.mxu0 %v252
    %272 = vmatprep.subr.bf16.mxu0 0
    %273 = vmatpush1.bf16.msra.mxu0 %v251
    %274 = vmatprep.subr.bf16.mxu0 0
    %275 = vmatpush1.bf16.msra.mxu0 %v250
    %276 = vmatprep.subr.bf16.mxu0 0
    %277 = vmatpush1.bf16.msra.mxu0 %v249
    %278 = vmatprep.subr.bf16.mxu0 0
    %279 = vmatpush1.bf16.msra.mxu0 %v248
    %280 = vmatprep.subr.bf16.mxu0 0
    %281 = vmatpush2.bf16.msra.mxu0 0
    %282 = vmatprep.subr.bf16.mxu0 0
    %283 = vmatpush2.bf16.msra.mxu0 0
    %284 = vmatprep.subr.bf16.mxu0 0
    %285 = vmatpush2.bf16.msra.mxu0 0
    %286 = vmatprep.subr.bf16.mxu0 0
    %287 = vmatpush2.bf16.msra.mxu0 0
    %288 = vmatprep.subr.bf16.mxu0 0
    %289 = vmatpush2.bf16.msra.mxu0 0
    %290 = vmatprep.subr.bf16.mxu0 0
    %291 = vmatpush2.bf16.msra.mxu0 0
    %292 = vmatprep.subr.bf16.mxu0 0
    %293 = vmatpush2.bf16.msra.mxu0 0
    %294 = vmatprep.subr.bf16.mxu0 0
    %295 = vmatpush2.bf16.msra.mxu0 0
    %296 = vmatprep.mubr.bf16.mxu0 0
    %297 = vmatmul.mubr.bf16.gmra.mxu0 %v214
    %v298 = vpop.f32.mrf.mxu0
    %v299 = vadd.f32 %v208, %v298
    %v300 = vpop.f32.mrf.mxu0
    %v301 = vpop.f32.mrf.mxu0
    %v302 = vadd.f32 %v208, %v301
    %v303 = vpop.f32.mrf.mxu0
    %304 = vdwg.mxu0
    %305 = vst [vmem:[%s5] sm:$0xff] %v299
    %306 = vst [vmem:[%s5 + $0x8] sm:$0xff] %v302
    // Predicated region
    $region34: #{basic_head_forward.1} parent=1 // pred_check
      _
    $region35: #{basic_head_forward.1} parent=1 // pred_check_branch
      %308 = sbr.rel (0) target = $region37
    $region36: #{basic_head_forward.1} parent=1 // pred_region
      _
    $region37: #{basic_head_forward.1} parent=1 // pred_fallthru
      _
    // Predicated region
    $region38: #{basic_head_forward.1} parent=1 // pred_check
      _
    $region39: #{basic_head_forward.1} parent=1 // pred_check_branch
      %310 = sbr.rel (0) target = $region41
    $region40: #{basic_head_forward.1} parent=1 // pred_region
      _
    $region41: #{basic_head_forward.1} parent=1 // pred_fallthru
      _
    %311 = vsyncpa [#allocation4], 1
    %312 = vsyncpa [#allocation6], 1

</llo_original>
